<compile_context>
chip_gen: v6e
topology: v6e:2x2x1
jax: 0.10.0
libtpu: 0.0.40
codegen_flags: <defaults>
</compile_context>

<pallas_src>
import functools

import jax
import jax.numpy as jnp
from jax.experimental import pallas as pl
from jax.experimental.pallas import tpu as pltpu


NEG_SLOPE = 0.2  # nn.LeakyReLU(0.2)


def _leaky_relu(x):
    return jnp.where(x > 0, x, NEG_SLOPE * x)


def _round_up(n, m):
    return ((n + m - 1) // m) * m


def _pick_bm(batch, block_m):
    """Batch tile: big (amortize ~0.35us/step), but keep grid >= 2 for v7x."""
    if batch >= 512:
        bm = _round_up((batch + 1) // 2, 256)   # at least two >=256-row tiles
    else:
        bm = _round_up(batch, 16)               # tiny batches: one small tile
    return min(block_m, bm)


def encoder_kernel(x_ref, w_in_ref, b_in_ref, w_h_ref, b_h_ref,
                   w_out_ref, b_out_ref, o_ref):
    """Fused 3-layer MLP forward for one batch tile (weights resident in VMEM).

    All operands arrive in f32; MXU matmuls use bf16 operands cast on the VPU
    in-kernel (no separate convert HLO / HBM pass) with f32 accumulation.
    Bias adds and activations (LeakyReLU / Tanh) stay in f32 (v5e-safe).
    """
    bf16 = jnp.bfloat16
    x = x_ref[...].astype(bf16)

    # layer_in + LeakyReLU
    h = jnp.dot(x, w_in_ref[...].astype(bf16),
                preferred_element_type=jnp.float32)
    h = _leaky_relu(h + b_in_ref[...])

    # hidden[0] + LeakyReLU   (nb_hidden == 1 configuration)
    h = jnp.dot(h.astype(bf16), w_h_ref[...].astype(bf16),
                preferred_element_type=jnp.float32)
    h = _leaky_relu(h + b_h_ref[...])

    # layer_out + Tanh (EUP)
    h = jnp.dot(h.astype(bf16), w_out_ref[...].astype(bf16),
                preferred_element_type=jnp.float32)
    o_ref[...] = jnp.tanh(h + b_out_ref[...]).astype(o_ref.dtype)


@functools.partial(jax.jit, static_argnames=("block_m",))
def encoder_forward(x, params, block_m=1024):
    """x: (B, input_dim) float32. Returns (B, latent_dim) float32."""
    w_in, b_in, w_h, b_h, w_out, b_out = params
    B, input_dim = x.shape
    h1 = w_in.shape[1]
    hout = w_h.shape[1]
    latent_dim = w_out.shape[1]

    bm = _pick_bm(B, block_m)
    grid = (pl.cdiv(B, bm),)

    # Weights/biases: full-array blocks with constant index_map -> DMA'd once,
    # VMEM-resident across all grid steps.
    full = lambda shape: pl.BlockSpec(shape, lambda i: tuple(0 for _ in shape))

    weight_bytes = (input_dim * h1 + h1 * hout + hout * latent_dim) * 4
    cost = pl.CostEstimate(
        flops=2 * B * (input_dim * h1 + h1 * hout + hout * latent_dim),
        transcendentals=B * latent_dim,  # tanh
        bytes_accessed=(B * input_dim * 4            # x (f32, single read)
                        + B * latent_dim * 4         # output (f32)
                        + weight_bytes
                        + (h1 + hout + latent_dim) * 4),
    )

    out = pl.pallas_call(
        encoder_kernel,
        out_shape=jax.ShapeDtypeStruct((B, latent_dim), jnp.float32),
        grid_spec=pltpu.PrefetchScalarGridSpec(
            num_scalar_prefetch=0,
            grid=grid,
            in_specs=[
                pl.BlockSpec((bm, input_dim), lambda i: (i, 0)),  # x tile (f32)
                full((input_dim, h1)),        # w_in  (f32, cast in-kernel)
                full((1, h1)),                # b_in  (f32)
                full((h1, hout)),             # w_h   (f32, cast in-kernel)
                full((1, hout)),              # b_h   (f32)
                full((hout, latent_dim)),     # w_out (f32, cast in-kernel)
                full((1, latent_dim)),        # b_out (f32)
            ],
            out_specs=pl.BlockSpec((bm, latent_dim), lambda i: (i, 0)),
        ),
        compiler_params=pltpu.CompilerParams(
            dimension_semantics=("parallel",)),
        cost_estimate=cost,
    )(x, w_in, b_in, w_h, b_h, w_out, b_out)

    return out


def init_params(key, input_dim, latent_dim):
    """Deterministic init matching Encoder(input_dim, latent_dim, nb_hidden=1)."""
    hidden1_dim = 264   # model config (not 128-aligned; ~31% padded lanes; kept to match spec)
    hidden_out_dim = 64
    ks = jax.random.split(key, 6)

    def linear(kw, kb, fan_in, fan_out):
        bound = 1.0 / jnp.sqrt(fan_in)
        # Stored as (in, out) so the kernel computes x @ W + b == PyTorch x @ W_pt.T + b.
        w = jax.random.uniform(kw, (fan_in, fan_out), jnp.float32, -bound, bound)
        b = jax.random.uniform(kb, (1, fan_out), jnp.float32, -bound, bound)
        return w, b

    w_in, b_in = linear(ks[0], ks[1], input_dim, hidden1_dim)
    w_h, b_h = linear(ks[2], ks[3], hidden1_dim, hidden_out_dim)
    w_out, b_out = linear(ks[4], ks[5], hidden_out_dim, latent_dim)
    return (w_in, b_in, w_h, b_h, w_out, b_out)


def reference_forward_f32(x, params):
    w_in, b_in, w_h, b_h, w_out, b_out = params
    h = _leaky_relu(x @ w_in + b_in)
    h = _leaky_relu(h @ w_h + b_h)
    return jnp.tanh(h @ w_out + b_out)


def reference_forward_bf16(x, params):
    """Mirrors the kernel's bf16-operand / f32-accumulate numerics."""
    w_in, b_in, w_h, b_h, w_out, b_out = params
    bf = jnp.bfloat16
    dot = lambda a, b: jnp.dot(a.astype(bf), b.astype(bf),
                               preferred_element_type=jnp.float32)
    h = _leaky_relu(dot(x, w_in) + b_in)
    h = _leaky_relu(dot(h, w_h) + b_h)
    return jnp.tanh(dot(h, w_out) + b_out)


if __name__ == "__main__":
    key = jax.random.PRNGKey(0)
    k_x, k_p = jax.random.split(key)

    batch, input_dim, latent_dim = 2, 32, 8
    x = jax.random.normal(k_x, (batch, input_dim), jnp.float32)
    params = init_params(k_p, input_dim, latent_dim)

    out = jax.block_until_ready(encoder_forward(x, params))
    assert out.shape == (batch, latent_dim)

    ref_bf16 = reference_forward_bf16(x, params)
    ref_f32 = reference_forward_f32(x, params)
    assert jnp.allclose(out, ref_bf16, atol=1e-3, rtol=1e-3), "mismatch vs bf16 reference"
    assert jnp.allclose(out, ref_f32, atol=3e-2, rtol=3e-2), "mismatch vs f32 reference"

    # Larger ragged batch: exercises >=2 grid steps (v7x megacore sharding) and
    # the masked edge block (no wrapper-side pad).
    x_big = jax.random.normal(k_x, (1000, input_dim), jnp.float32)
    out_big = jax.block_until_ready(encoder_forward(x_big, params))
    assert out_big.shape == (1000, latent_dim)
    assert jnp.allclose(out_big, reference_forward_bf16(x_big, params),
                        atol=1e-3, rtol=1e-3), "mismatch vs bf16 reference (large batch)"

    print("KERNEL_OK")
</pallas_src>

<mosaic_0001>
module attributes {stable_mosaic.version = 11 : i64} {
  func.func @encoder_kernel(%arg0: i32, %arg1: memref<16x32xf32, #tpu.memory_space<vmem>>, %arg2: memref<32x264xf32, #tpu.memory_space<vmem>>, %arg3: memref<1x264xf32, #tpu.memory_space<vmem>>, %arg4: memref<264x64xf32, #tpu.memory_space<vmem>>, %arg5: memref<1x64xf32, #tpu.memory_space<vmem>>, %arg6: memref<64x8xf32, #tpu.memory_space<vmem>>, %arg7: memref<1x8xf32, #tpu.memory_space<vmem>>, %arg8: memref<16x8xf32, #tpu.memory_space<vmem>>) attributes {dimension_semantics = [#tpu.dimension_semantics<parallel>], iteration_bounds = array<i64: 1>, scalar_prefetch = 0 : i64, scratch_operands = 0 : i64, tpu.core_type = #tpu.core_type<tc>, window_params = [{transform_indices = @transform_0, window_bounds = array<i64: 16, 32>}, {pipeline_mode = #tpu.pipeline_mode<synchronous>, transform_indices = @transform_1, window_bounds = array<i64: 32, 264>}, {pipeline_mode = #tpu.pipeline_mode<synchronous>, transform_indices = @transform_2, window_bounds = array<i64: 1, 264>}, {pipeline_mode = #tpu.pipeline_mode<synchronous>, transform_indices = @transform_3, window_bounds = array<i64: 264, 64>}, {pipeline_mode = #tpu.pipeline_mode<synchronous>, transform_indices = @transform_4, window_bounds = array<i64: 1, 64>}, {pipeline_mode = #tpu.pipeline_mode<synchronous>, transform_indices = @transform_5, window_bounds = array<i64: 64, 8>}, {pipeline_mode = #tpu.pipeline_mode<synchronous>, transform_indices = @transform_6, window_bounds = array<i64: 1, 8>}, {transform_indices = @transform_7, window_bounds = array<i64: 16, 8>}]} {
    %c0 = arith.constant 0 : index
    %c0_0 = arith.constant 0 : index
    %0 = vector.load %arg1[%c0, %c0_0] : memref<16x32xf32, #tpu.memory_space<vmem>>, vector<16x32xf32>
    %1 = arith.truncf %0 : vector<16x32xf32> to vector<16x32xbf16>
    %c0_1 = arith.constant 0 : index
    %c0_2 = arith.constant 0 : index
    %2 = vector.load %arg2[%c0_1, %c0_2] : memref<32x264xf32, #tpu.memory_space<vmem>>, vector<32x264xf32>
    %3 = arith.truncf %2 : vector<32x264xf32> to vector<32x264xbf16>
    %cst = arith.constant dense<0.000000e+00> : vector<16x264xf32>
    %4 = tpu.matmul %1, %3, %cst {dimension_numbers = #tpu.dot_dimension_numbers<[1], [0], [0], [1], [0, 0, 1, 1], [], []>} : vector<16x32xbf16>, vector<32x264xbf16>, vector<16x264xf32> -> vector<16x264xf32>
    %c0_3 = arith.constant 0 : index
    %c0_4 = arith.constant 0 : index
    %5 = vector.load %arg3[%c0_3, %c0_4] : memref<1x264xf32, #tpu.memory_space<vmem>>, vector<1x264xf32>
    %6 = vector.broadcast %5 : vector<1x264xf32> to vector<16x264xf32>
    %7 = arith.addf %4, %6 : vector<16x264xf32>
    %cst_5 = arith.constant 0.000000e+00 : f32
    %8 = vector.broadcast %cst_5 : f32 to vector<16x264xf32>
    %9 = arith.cmpf ogt, %7, %8 : vector<16x264xf32>
    %cst_6 = arith.constant 2.000000e-01 : f32
    %10 = vector.broadcast %cst_6 : f32 to vector<16x264xf32>
    %11 = arith.mulf %10, %7 : vector<16x264xf32>
    %12 = arith.select %9, %7, %11 : vector<16x264xi1>, vector<16x264xf32>
    %13 = arith.truncf %12 : vector<16x264xf32> to vector<16x264xbf16>
    %c0_7 = arith.constant 0 : index
    %c0_8 = arith.constant 0 : index
    %14 = vector.load %arg4[%c0_7, %c0_8] : memref<264x64xf32, #tpu.memory_space<vmem>>, vector<264x64xf32>
    %15 = arith.truncf %14 : vector<264x64xf32> to vector<264x64xbf16>
    %cst_9 = arith.constant dense<0.000000e+00> : vector<16x64xf32>
    %16 = tpu.matmul %13, %15, %cst_9 {dimension_numbers = #tpu.dot_dimension_numbers<[1], [0], [0], [1], [0, 0, 1, 1], [], []>} : vector<16x264xbf16>, vector<264x64xbf16>, vector<16x64xf32> -> vector<16x64xf32>
    %c0_10 = arith.constant 0 : index
    %c0_11 = arith.constant 0 : index
    %17 = vector.load %arg5[%c0_10, %c0_11] : memref<1x64xf32, #tpu.memory_space<vmem>>, vector<1x64xf32>
    %18 = vector.broadcast %17 : vector<1x64xf32> to vector<16x64xf32>
    %19 = arith.addf %16, %18 : vector<16x64xf32>
    %cst_12 = arith.constant 0.000000e+00 : f32
    %20 = vector.broadcast %cst_12 : f32 to vector<16x64xf32>
    %21 = arith.cmpf ogt, %19, %20 : vector<16x64xf32>
    %cst_13 = arith.constant 2.000000e-01 : f32
    %22 = vector.broadcast %cst_13 : f32 to vector<16x64xf32>
    %23 = arith.mulf %22, %19 : vector<16x64xf32>
    %24 = arith.select %21, %19, %23 : vector<16x64xi1>, vector<16x64xf32>
    %25 = arith.truncf %24 : vector<16x64xf32> to vector<16x64xbf16>
    %c0_14 = arith.constant 0 : index
    %c0_15 = arith.constant 0 : index
    %26 = vector.load %arg6[%c0_14, %c0_15] : memref<64x8xf32, #tpu.memory_space<vmem>>, vector<64x8xf32>
    %27 = arith.truncf %26 : vector<64x8xf32> to vector<64x8xbf16>
    %cst_16 = arith.constant dense<0.000000e+00> : vector<16x8xf32>
    %28 = tpu.matmul %25, %27, %cst_16 {dimension_numbers = #tpu.dot_dimension_numbers<[1], [0], [0], [1], [0, 0, 1, 1], [], []>} : vector<16x64xbf16>, vector<64x8xbf16>, vector<16x8xf32> -> vector<16x8xf32>
    %c0_17 = arith.constant 0 : index
    %c0_18 = arith.constant 0 : index
    %29 = vector.load %arg7[%c0_17, %c0_18] : memref<1x8xf32, #tpu.memory_space<vmem>>, vector<1x8xf32>
    %30 = vector.broadcast %29 : vector<1x8xf32> to vector<16x8xf32>
    %31 = arith.addf %28, %30 : vector<16x8xf32>
    %32 = math.tanh %31 : vector<16x8xf32>
    %c0_19 = arith.constant 0 : index
    %c0_20 = arith.constant 0 : index
    %33 = vector.load %arg8[%c0_19, %c0_20] : memref<16x8xf32, #tpu.memory_space<vmem>>, vector<16x8xf32>
    tpu.vector_store %arg8[%c0_19, %c0_20], %32 {strides = array<i32>} : memref<16x8xf32, #tpu.memory_space<vmem>>, vector<16x8xf32>,
    return
  }
  func.func @transform_0(%arg0: i32) -> (i32, i32) {
    %c0_i32 = arith.constant 0 : i32
    %c0_i32_0 = arith.constant 0 : i32
    return %arg0, %c0_i32 : i32, i32
  }
  func.func @transform_1(%arg0: i32) -> (i32, i32) {
    %c0_i32 = arith.constant 0 : i32
    %c0_i32_0 = arith.constant 0 : i32
    %c0_i32_1 = arith.constant 0 : i32
    return %c0_i32, %c0_i32_0 : i32, i32
  }
  func.func @transform_2(%arg0: i32) -> (i32, i32) {
    %c0_i32 = arith.constant 0 : i32
    %c0_i32_0 = arith.constant 0 : i32
    %c0_i32_1 = arith.constant 0 : i32
    return %c0_i32, %c0_i32_0 : i32, i32
  }
  func.func @transform_3(%arg0: i32) -> (i32, i32) {
    %c0_i32 = arith.constant 0 : i32
    %c0_i32_0 = arith.constant 0 : i32
    %c0_i32_1 = arith.constant 0 : i32
    return %c0_i32, %c0_i32_0 : i32, i32
  }
  func.func @transform_4(%arg0: i32) -> (i32, i32) {
    %c0_i32 = arith.constant 0 : i32
    %c0_i32_0 = arith.constant 0 : i32
    %c0_i32_1 = arith.constant 0 : i32
    return %c0_i32, %c0_i32_0 : i32, i32
  }
  func.func @transform_5(%arg0: i32) -> (i32, i32) {
    %c0_i32 = arith.constant 0 : i32
    %c0_i32_0 = arith.constant 0 : i32
    %c0_i32_1 = arith.constant 0 : i32
    return %c0_i32, %c0_i32_0 : i32, i32
  }
  func.func @transform_6(%arg0: i32) -> (i32, i32) {
    %c0_i32 = arith.constant 0 : i32
    %c0_i32_0 = arith.constant 0 : i32
    %c0_i32_1 = arith.constant 0 : i32
    return %c0_i32, %c0_i32_0 : i32, i32
  }
  func.func @transform_7(%arg0: i32) -> (i32, i32) {
    %c0_i32 = arith.constant 0 : i32
    %c0_i32_0 = arith.constant 0 : i32
    return %arg0, %c0_i32 : i32, i32
  }
}

</mosaic_0001>

<llo_original>
// kernel: encoder_forward.1
$region0: #{encoder_forward.1}
  #allocation0 [shape = 'u32[]', space=smem, size = 0x4, offset = 0x4, fixed_abs, tag = 'smem constant byte address 0x4 - core index']
  #allocation1 [shape = 'u32[144,128]{1,0:T(1,128)}', space=vmem, size = 0x12000, scoped, tag = 'internal scratch']
  %s0 = inlined_call_operand.vmem [shape: f32[2,32], index: 0, kind: input, shape index: {}]
  %s1 = inlined_call_operand.vmem [shape: f32[32,264], index: 1, kind: input, shape index: {}]
  %s2 = inlined_call_operand.vmem [shape: f32[1,264], index: 2, kind: input, shape index: {}]
  %s3 = inlined_call_operand.vmem [shape: f32[264,64], index: 3, kind: input, shape index: {}]
  %s4 = inlined_call_operand.vmem [shape: f32[1,64], index: 4, kind: input, shape index: {}]
  %s5 = inlined_call_operand.vmem [shape: f32[64,8], index: 5, kind: input, shape index: {}]
  %s6 = inlined_call_operand.vmem [shape: f32[1,8], index: 6, kind: input, shape index: {}]
  %s7 = inlined_call_operand.hbm [shape: f32[2,8], index: 7, kind: output, shape index: {}]
  %s8 = sld [smem:[#allocation0]]
  $region38: #{encoder_forward.1} parent=0
    _
  %s10 = ssub.s32 1, %s8
  %s11 = scalar_select 0, %s10, %s8
  $region1: #{encoder_forward.1} parent=0
    #allocation2 [shape = 'u8[8192]{0}', space=vmem, size = 0x2000, scoped, tag = 'output window, operand 0, single buffered']
    #allocation3 [shape = 's32[1]{0}', space=sflag, size = 0x4, scoped, tag = 'scoped memory for encoder_forward.1']
    %12 = vsyncpa [#allocation3], 0
    // Predicated region
    $region2: #{encoder_forward.1} parent=1 // pred_check
      _
    $region3: #{encoder_forward.1} parent=1 // pred_check_branch
      %14 = sbr.rel (0) target = $region5
    $region4: #{encoder_forward.1} parent=1 // pred_region
      _
    $region5: #{encoder_forward.1} parent=1 // pred_fallthru
      _
    // Predicated region
    $region6: #{encoder_forward.1} parent=1 // pred_check
      _
    $region7: #{encoder_forward.1} parent=1 // pred_check_branch
      %16 = sbr.rel (0) target = $region9
    $region8: #{encoder_forward.1} parent=1 // pred_region
      _
    $region9: #{encoder_forward.1} parent=1 // pred_fallthru
      _
    // Predicated region
    $region10: #{encoder_forward.1} parent=1 // pred_check
      _
    $region11: #{encoder_forward.1} parent=1 // pred_check_branch
      %18 = sbr.rel (0) target = $region13
    $region12: #{encoder_forward.1} parent=1 // pred_region
      _
    $region13: #{encoder_forward.1} parent=1 // pred_fallthru
      _
    // Predicated region
    $region14: #{encoder_forward.1} parent=1 // pred_check
      _
    $region15: #{encoder_forward.1} parent=1 // pred_check_branch
      %20 = sbr.rel (0) target = $region17
    $region16: #{encoder_forward.1} parent=1 // pred_region
      _
    $region17: #{encoder_forward.1} parent=1 // pred_fallthru
      _
    // Predicated region
    $region18: #{encoder_forward.1} parent=1 // pred_check
      _
    $region19: #{encoder_forward.1} parent=1 // pred_check_branch
      %22 = sbr.rel (0) target = $region21
    $region20: #{encoder_forward.1} parent=1 // pred_region
      _
    $region21: #{encoder_forward.1} parent=1 // pred_fallthru
      _
    // Predicated region
    $region22: #{encoder_forward.1} parent=1 // pred_check
      _
    $region23: #{encoder_forward.1} parent=1 // pred_check_branch
      %24 = sbr.rel (0) target = $region25
    $region24: #{encoder_forward.1} parent=1 // pred_region
      _
    $region25: #{encoder_forward.1} parent=1 // pred_fallthru
      _
    // Predicated region
    $region26: #{encoder_forward.1} parent=1 // pred_check
      _
    $region27: #{encoder_forward.1} parent=1 // pred_check_branch
      %26 = sbr.rel (0) target = $region29
    $region28: #{encoder_forward.1} parent=1 // pred_region
      _
    $region29: #{encoder_forward.1} parent=1 // pred_fallthru
      _
    %v28 = vld [vmem:[%s0] sm:$0xff]
    %v29 = vld [vmem:[%s0 + $0x8] sm:$0xff]
    %v30 = vpack.c.bf16 %v29, %v28
    %v31 = vld [vmem:[%s1] sm:$0xff]
    %v32 = vld [vmem:[%s1 + $0x8] sm:$0xff]
    %v33 = vld [vmem:[%s1 + $0x10] sm:$0xff]
    %v34 = vld [vmem:[%s1 + $0x18] sm:$0xff]
    %v35 = vld [vmem:[%s1 + $0x20] sm:$0xff]
    %v36 = vld [vmem:[%s1 + $0x28] sm:$0xff]
    %v37 = vld [vmem:[%s1 + $0x30] sm:$0xff]
    %v38 = vld [vmem:[%s1 + $0x38] sm:$0xff]
    %v39 = vld [vmem:[%s1 + $0x40] sm:$0xff]
    %v40 = vld [vmem:[%s1 + $0x48] sm:$0xff]
    %v41 = vld [vmem:[%s1 + $0x50] sm:$0xff]
    %v42 = vld [vmem:[%s1 + $0x58] sm:$0xff]
    %v43 = vpack.c.bf16 %v34, %v31
    %v44 = vpack.c.bf16 %v35, %v32
    %v45 = vpack.c.bf16 %v36, %v33
    %v46 = vpack.c.bf16 %v40, %v37
    %v47 = vpack.c.bf16 %v41, %v38
    %v48 = vpack.c.bf16 %v42, %v39
    %v49 = vld [vmem:[%s2] sm:$0x7]
    %v51 = vlaneseq
    %v52 = vshrl.u32 %v51, 7
    %v53 = vsub.s32 0, %v52
    %v54 = vrot.slane %v49, %v53
    %v55 = vlaneseq
    %v56 = vshrl.u32 %v55, 7
    %v57 = vsub.s32 1, %v56
    %v58 = vrot.slane %v49, %v57
    %v59 = vlaneseq
    %v60 = vshrl.u32 %v59, 7
    %v61 = vsub.s32 2, %v60
    %v62 = vrot.slane %v49, %v61
    %vm66 = vcmask 261120
    %v68 = vsel %vm66, %v30, 0
    %70 = vmatprep.subr.bf16.mxu0 0
    %71 = vmatpush1.bf16.msra.mxu0 0
    %72 = vmatprep.subr.bf16.mxu0 0
    %73 = vmatpush1.bf16.msra.mxu0 0
    %74 = vmatprep.subr.bf16.mxu0 0
    %75 = vmatpush1.bf16.msra.mxu0 0
    %76 = vmatprep.subr.bf16.mxu0 0
    %77 = vmatpush1.bf16.msra.mxu0 0
    %78 = vmatprep.subr.bf16.mxu0 0
    %79 = vmatpush1.bf16.msra.mxu0 0
    %80 = vmatprep.subr.bf16.mxu0 0
    %81 = vmatpush1.bf16.msra.mxu0 0
    %82 = vmatprep.subr.bf16.mxu0 %v47
    %83 = vmatpush1.bf16.msra.mxu0 %v46
    %84 = vmatprep.subr.bf16.mxu0 %v44
    %85 = vmatpush1.bf16.msra.mxu0 %v43
    %86 = vmatprep.subr.bf16.mxu0 0
    %87 = vmatpush2.bf16.msra.mxu0 0
    %88 = vmatprep.subr.bf16.mxu0 0
    %89 = vmatpush2.bf16.msra.mxu0 0
    %90 = vmatprep.subr.bf16.mxu0 0
    %91 = vmatpush2.bf16.msra.mxu0 0
    %92 = vmatprep.subr.bf16.mxu0 0
    %93 = vmatpush2.bf16.msra.mxu0 0
    %94 = vmatprep.subr.bf16.mxu0 0
    %95 = vmatpush2.bf16.msra.mxu0 0
    %96 = vmatprep.subr.bf16.mxu0 0
    %97 = vmatpush2.bf16.msra.mxu0 0
    %98 = vmatprep.subr.bf16.mxu0 0
    %99 = vmatpush2.bf16.msra.mxu0 0
    %100 = vmatprep.subr.bf16.mxu0 0
    %101 = vmatpush2.bf16.msra.mxu0 0
    %102 = vmatprep.mubr.bf16.mxu0 0
    %103 = vmatmul.mubr.bf16.gmra.mxu0 %v68
    %v104 = vpop.f32.mrf.mxu0
    %v105 = vadd.f32 %v54, %v104
    %v106 = vpop.f32.mrf.mxu0
    %v107 = vadd.f32 %v58, %v106
    %v108 = vpop.f32.mrf.mxu0
    %v109 = vadd.f32 %v54, %v108
    %v110 = vpop.f32.mrf.mxu0
    %v111 = vadd.f32 %v58, %v110
    %112 = vdwg.mxu0
    %113 = vmatprep.subr.bf16.mxu0 0
    %114 = vmatpush1.bf16.msra.mxu0 0
    %115 = vmatprep.subr.bf16.mxu0 0
    %116 = vmatpush1.bf16.msra.mxu0 0
    %117 = vmatprep.subr.bf16.mxu0 0
    %118 = vmatpush1.bf16.msra.mxu0 0
    %119 = vmatprep.subr.bf16.mxu0 0
    %120 = vmatpush1.bf16.msra.mxu0 0
    %121 = vmatprep.subr.bf16.mxu0 0
    %122 = vmatpush1.bf16.msra.mxu0 0
    %123 = vmatprep.subr.bf16.mxu0 0
    %124 = vmatpush1.bf16.msra.mxu0 0
    %125 = vmatprep.subr.bf16.mxu0 0
    %126 = vmatpush1.bf16.msra.mxu0 %v48
    %127 = vmatprep.subr.bf16.mxu0 0
    %128 = vmatpush1.bf16.msra.mxu0 %v45
    %129 = vmatprep.subr.bf16.mxu0 0
    %130 = vmatpush2.bf16.msra.mxu0 0
    %131 = vmatprep.subr.bf16.mxu0 0
    %132 = vmatpush2.bf16.msra.mxu0 0
    %133 = vmatprep.subr.bf16.mxu0 0
    %134 = vmatpush2.bf16.msra.mxu0 0
    %135 = vmatprep.subr.bf16.mxu0 0
    %136 = vmatpush2.bf16.msra.mxu0 0
    %137 = vmatprep.subr.bf16.mxu0 0
    %138 = vmatpush2.bf16.msra.mxu0 0
    %139 = vmatprep.subr.bf16.mxu0 0
    %140 = vmatpush2.bf16.msra.mxu0 0
    %141 = vmatprep.subr.bf16.mxu0 0
    %142 = vmatpush2.bf16.msra.mxu0 0
    %143 = vmatprep.subr.bf16.mxu0 0
    %144 = vmatpush2.bf16.msra.mxu0 0
    %145 = vmatprep.mubr.bf16.mxu0 0
    %146 = vmatmul.mubr.bf16.gmra.mxu0 %v68
    %v147 = vpop.f32.mrf.mxu0
    %v148 = vadd.f32 %v62, %v147
    %v149 = vpop.f32.mrf.mxu0
    %v150 = vpop.f32.mrf.mxu0
    %v151 = vadd.f32 %v62, %v150
    %v152 = vpop.f32.mrf.mxu0
    %153 = vdwg.mxu0
    %vm154 = vcmp.gt.f32.partialorder %v105, 0.0
    %vm155 = vcmp.gt.f32.partialorder %v107, 0.0
    %vm156 = vcmp.gt.f32.partialorder %v148, 0.0
    %vm157 = vcmp.gt.f32.partialorder %v109, 0.0
    %vm158 = vcmp.gt.f32.partialorder %v111, 0.0
    %vm159 = vcmp.gt.f32.partialorder %v151, 0.0
    %v160 = vmul.f32 %v105, 0.2
    %v161 = vmul.f32 %v107, 0.2
    %v162 = vmul.f32 %v148, 0.2
    %v163 = vmul.f32 %v109, 0.2
    %v164 = vmul.f32 %v111, 0.2
    %v165 = vmul.f32 %v151, 0.2
    %v166 = vsel %vm154, %v105, %v160
    %v167 = vsel %vm155, %v107, %v161
    %v168 = vsel %vm156, %v148, %v162
    %v169 = vsel %vm157, %v109, %v163
    %v170 = vsel %vm158, %v111, %v164
    %v171 = vsel %vm159, %v151, %v165
    %v172 = vpack.c.bf16 %v169, %v166
    %v173 = vpack.c.bf16 %v170, %v167
    %v174 = vpack.c.bf16 %v171, %v168
    %v175 = vld [vmem:[%s3] sm:$0xff]
    %v176 = vld [vmem:[%s3 + $0x8] sm:$0xff]
    %v177 = vld [vmem:[%s3 + $0x10] sm:$0xff]
    %v178 = vld [vmem:[%s3 + $0x18] sm:$0xff]
    %v179 = vld [vmem:[%s3 + $0x20] sm:$0xff]
    %v180 = vld [vmem:[%s3 + $0x28] sm:$0xff]
    %v181 = vld [vmem:[%s3 + $0x30] sm:$0xff]
    %v182 = vld [vmem:[%s3 + $0x38] sm:$0xff]
    %v183 = vld [vmem:[%s3 + $0x40] sm:$0xff]
    %v184 = vld [vmem:[%s3 + $0x48] sm:$0xff]
    %v185 = vld [vmem:[%s3 + $0x50] sm:$0xff]
    %v186 = vld [vmem:[%s3 + $0x58] sm:$0xff]
    %v187 = vld [vmem:[%s3 + $0x60] sm:$0xff]
    %v188 = vld [vmem:[%s3 + $0x68] sm:$0xff]
    %v189 = vld [vmem:[%s3 + $0x70] sm:$0xff]
    %v190 = vld [vmem:[%s3 + $0x78] sm:$0xff]
    %v191 = vld [vmem:[%s3 + $0x80] sm:$0xff]
    %v192 = vld [vmem:[%s3 + $0x88] sm:$0xff]
    %v193 = vld [vmem:[%s3 + $0x90] sm:$0xff]
    %v194 = vld [vmem:[%s3 + $0x98] sm:$0xff]
    %v195 = vld [vmem:[%s3 + $0xa0] sm:$0xff]
    %v196 = vld [vmem:[%s3 + $0xa8] sm:$0xff]
    %v197 = vld [vmem:[%s3 + $0xb0] sm:$0xff]
    %v198 = vld [vmem:[%s3 + $0xb8] sm:$0xff]
    %v199 = vld [vmem:[%s3 + $0xc0] sm:$0xff]
    %v200 = vld [vmem:[%s3 + $0xc8] sm:$0xff]
    %v201 = vld [vmem:[%s3 + $0xd0] sm:$0xff]
    %v202 = vld [vmem:[%s3 + $0xd8] sm:$0xff]
    %v203 = vld [vmem:[%s3 + $0xe0] sm:$0xff]
    %v204 = vld [vmem:[%s3 + $0xe8] sm:$0xff]
    %v205 = vld [vmem:[%s3 + $0xf0] sm:$0xff]
    %v206 = vld [vmem:[%s3 + $0xf8] sm:$0xff]
    %v207 = vld [vmem:[%s3 + $0x100] sm:$0xff]
    %v208 = vpack.c.bf16 %v176, %v175
    %v209 = vpack.c.bf16 %v178, %v177
    %v210 = vpack.c.bf16 %v180, %v179
    %v211 = vpack.c.bf16 %v182, %v181
    %v212 = vpack.c.bf16 %v184, %v183
    %v213 = vpack.c.bf16 %v186, %v185
    %v214 = vpack.c.bf16 %v188, %v187
    %v215 = vpack.c.bf16 %v190, %v189
    %v216 = vpack.c.bf16 %v192, %v191
    %v217 = vpack.c.bf16 %v194, %v193
    %v218 = vpack.c.bf16 %v196, %v195
    %v219 = vpack.c.bf16 %v198, %v197
    %v220 = vpack.c.bf16 %v200, %v199
    %v221 = vpack.c.bf16 %v202, %v201
    %v222 = vpack.c.bf16 %v204, %v203
    %v223 = vpack.c.bf16 %v206, %v205
    %v224 = vpack.c.bf16 %v207, %v207
    %v225 = vld [vmem:[%s4] sm:$0x1]
    %v227 = vlaneseq
    %v228 = vshrl.u32 %v227, 7
    %v229 = vsub.s32 0, %v228
    %v230 = vrot.slane %v225, %v229
    %vm232 = vcmask 64512
    %v234 = vsel %vm232, %v174, 0
    %vm236 = vcmask 1043456
    %v238 = vsel %vm236, %v224, 0
    %240 = vmatprep.subr.bf16.mxu0 0
    %241 = vmatpush1.bf16.msra.mxu0 %v215
    %242 = vmatprep.subr.bf16.mxu0 0
    %243 = vmatpush1.bf16.msra.mxu0 %v214
    %244 = vmatprep.subr.bf16.mxu0 0
    %245 = vmatpush1.bf16.msra.mxu0 %v213
    %246 = vmatprep.subr.bf16.mxu0 0
    %247 = vmatpush1.bf16.msra.mxu0 %v212
    %248 = vmatprep.subr.bf16.mxu0 0
    %249 = vmatpush1.bf16.msra.mxu0 %v211
    %250 = vmatprep.subr.bf16.mxu0 0
    %251 = vmatpush1.bf16.msra.mxu0 %v210
    %252 = vmatprep.subr.bf16.mxu0 0
    %253 = vmatpush1.bf16.msra.mxu0 %v209
    %254 = vmatprep.subr.bf16.mxu0 0
    %255 = vmatpush1.bf16.msra.mxu0 %v208
    %256 = vmatprep.subr.bf16.mxu0 0
    %257 = vmatpush2.bf16.msra.mxu0 %v223
    %258 = vmatprep.subr.bf16.mxu0 0
    %259 = vmatpush2.bf16.msra.mxu0 %v222
    %260 = vmatprep.subr.bf16.mxu0 0
    %261 = vmatpush2.bf16.msra.mxu0 %v221
    %262 = vmatprep.subr.bf16.mxu0 0
    %263 = vmatpush2.bf16.msra.mxu0 %v220
    %264 = vmatprep.subr.bf16.mxu0 0
    %265 = vmatpush2.bf16.msra.mxu0 %v219
    %266 = vmatprep.subr.bf16.mxu0 0
    %267 = vmatpush2.bf16.msra.mxu0 %v218
    %268 = vmatprep.subr.bf16.mxu0 0
    %269 = vmatpush2.bf16.msra.mxu0 %v217
    %270 = vmatprep.subr.bf16.mxu0 0
    %271 = vmatpush2.bf16.msra.mxu0 %v216
    %272 = vmatprep.mubr.bf16.mxu0 %v173
    %273 = vmatmul.mubr.bf16.gmra.mxu0 %v172
    %v274 = vpop.f32.mrf.mxu0
    %v275 = vadd.f32 %v230, %v274
    %v276 = vpop.f32.mrf.mxu0
    %v277 = vpop.f32.mrf.mxu0
    %v278 = vadd.f32 %v230, %v277
    %v279 = vpop.f32.mrf.mxu0
    %280 = vdwg.mxu0
    %281 = vmatprep.subr.bf16.mxu0 0
    %282 = vmatpush1.bf16.msra.mxu0 0
    %283 = vmatprep.subr.bf16.mxu0 0
    %284 = vmatpush1.bf16.msra.mxu0 0
    %285 = vmatprep.subr.bf16.mxu0 0
    %286 = vmatpush1.bf16.msra.mxu0 0
    %287 = vmatprep.subr.bf16.mxu0 0
    %288 = vmatpush1.bf16.msra.mxu0 0
    %289 = vmatprep.subr.bf16.mxu0 0
    %290 = vmatpush1.bf16.msra.mxu0 0
    %291 = vmatprep.subr.bf16.mxu0 0
    %292 = vmatpush1.bf16.msra.mxu0 0
    %293 = vmatprep.subr.bf16.mxu0 0
    %294 = vmatpush1.bf16.msra.mxu0 0
    %295 = vmatprep.subr.bf16.mxu0 0
    %296 = vmatpush1.bf16.msra.mxu0 %v238
    %297 = vmatprep.subr.bf16.mxu0 0
    %298 = vmatpush2.bf16.msra.mxu0 0
    %299 = vmatprep.subr.bf16.mxu0 0
    %300 = vmatpush2.bf16.msra.mxu0 0
    %301 = vmatprep.subr.bf16.mxu0 0
    %302 = vmatpush2.bf16.msra.mxu0 0
    %303 = vmatprep.subr.bf16.mxu0 0
    %304 = vmatpush2.bf16.msra.mxu0 0
    %305 = vmatprep.subr.bf16.mxu0 0
    %306 = vmatpush2.bf16.msra.mxu0 0
    %307 = vmatprep.subr.bf16.mxu0 0
    %308 = vmatpush2.bf16.msra.mxu0 0
    %309 = vmatprep.subr.bf16.mxu0 0
    %310 = vmatpush2.bf16.msra.mxu0 0
    %311 = vmatprep.subr.bf16.mxu0 0
    %312 = vmatpush2.bf16.msra.mxu0 0
    %313 = vmatprep.mubr.bf16.mxu0 0
    %314 = vmatmul.mubr.bf16.gmra.mxu0 %v234
    %v315 = vpop.f32.mrf.mxu0
    %v316 = vadd.f32 %v275, %v315
    %v317 = vpop.f32.mrf.mxu0
    %v318 = vpop.f32.mrf.mxu0
    %v319 = vadd.f32 %v278, %v318
    %v320 = vpop.f32.mrf.mxu0
    %321 = vdwg.mxu0
    %vm322 = vcmp.gt.f32.partialorder %v316, 0.0
    %vm323 = vcmp.gt.f32.partialorder %v319, 0.0
    %v324 = vmul.f32 %v316, 0.2
    %v325 = vmul.f32 %v319, 0.2
    %v326 = vsel %vm322, %v316, %v324
    %v327 = vsel %vm323, %v319, %v325
    %v328 = vpack.c.bf16 %v327, %v326
    %v329 = vld [vmem:[%s5] sm:$0xff]
    %v330 = vld [vmem:[%s5 + $0x8] sm:$0xff]
    %v331 = vld [vmem:[%s5 + $0x10] sm:$0xff]
    %v332 = vld [vmem:[%s5 + $0x18] sm:$0xff]
    %v333 = vld [vmem:[%s5 + $0x20] sm:$0xff]
    %v334 = vld [vmem:[%s5 + $0x28] sm:$0xff]
    %v335 = vld [vmem:[%s5 + $0x30] sm:$0xff]
    %v336 = vld [vmem:[%s5 + $0x38] sm:$0xff]
    %v337 = vpack.c.bf16 %v330, %v329
    %v338 = vpack.c.bf16 %v332, %v331
    %v339 = vpack.c.bf16 %v334, %v333
    %v340 = vpack.c.bf16 %v336, %v335
    %v341 = vld [vmem:[%s6] sm:$0x1]
    %v343 = vlaneseq
    %v344 = vshrl.u32 %v343, 7
    %v345 = vsub.s32 0, %v344
    %v346 = vrot.slane %v341, %v345
    %vm348 = vcmask 523264
    %v350 = vsel %vm348, %v328, 0
    %352 = vmatprep.subr.bf16.mxu0 0
    %353 = vmatpush1.bf16.msra.mxu0 0
    %354 = vmatprep.subr.bf16.mxu0 0
    %355 = vmatpush1.bf16.msra.mxu0 0
    %356 = vmatprep.subr.bf16.mxu0 0
    %357 = vmatpush1.bf16.msra.mxu0 0
    %358 = vmatprep.subr.bf16.mxu0 0
    %359 = vmatpush1.bf16.msra.mxu0 0
    %360 = vmatprep.subr.bf16.mxu0 0
    %361 = vmatpush1.bf16.msra.mxu0 %v340
    %362 = vmatprep.subr.bf16.mxu0 0
    %363 = vmatpush1.bf16.msra.mxu0 %v339
    %364 = vmatprep.subr.bf16.mxu0 0
    %365 = vmatpush1.bf16.msra.mxu0 %v338
    %366 = vmatprep.subr.bf16.mxu0 0
    %367 = vmatpush1.bf16.msra.mxu0 %v337
    %368 = vmatprep.subr.bf16.mxu0 0
    %369 = vmatpush2.bf16.msra.mxu0 0
    %370 = vmatprep.subr.bf16.mxu0 0
    %371 = vmatpush2.bf16.msra.mxu0 0
    %372 = vmatprep.subr.bf16.mxu0 0
    %373 = vmatpush2.bf16.msra.mxu0 0
    %374 = vmatprep.subr.bf16.mxu0 0
    %375 = vmatpush2.bf16.msra.mxu0 0
    %376 = vmatprep.subr.bf16.mxu0 0
    %377 = vmatpush2.bf16.msra.mxu0 0
    %378 = vmatprep.subr.bf16.mxu0 0
    %379 = vmatpush2.bf16.msra.mxu0 0
    %380 = vmatprep.subr.bf16.mxu0 0
    %381 = vmatpush2.bf16.msra.mxu0 0
    %382 = vmatprep.subr.bf16.mxu0 0
    %383 = vmatpush2.bf16.msra.mxu0 0
    %384 = vmatprep.mubr.bf16.mxu0 0
    %385 = vmatmul.mubr.bf16.gmra.mxu0 %v350
    %v386 = vpop.f32.mrf.mxu0
    %v387 = vadd.f32 %v346, %v386
    %v388 = vpop.f32.mrf.mxu0
    %v389 = vpop.f32.mrf.mxu0
    %v390 = vadd.f32 %v346, %v389
    %v391 = vpop.f32.mrf.mxu0
    %392 = vdwg.mxu0
    %v393 = vtanh.pop %v387
    %v394 = vtanh.pop %v390
    %395 = vst.msk [vmem:[#allocation2] sm:$0xff] %vm232, %v393
    %396 = vst.msk [vmem:[#allocation2 + $0x8] sm:$0xff] %vm232, %v394
    // Predicated region
    $region30: #{encoder_forward.1} parent=1 // pred_check
      _
    $region31: #{encoder_forward.1} parent=1 // pred_check_branch
      %398 = sbr.rel (0) target = $region33
    $region32: #{encoder_forward.1} parent=1 // pred_region
      %s400 = ssub.s32 256, 32
      %401 = vsyncadd [#allocation3], %s400
      %s402 = sshll.u32 [#allocation2], 4
      %s403 = int_to_ptr.vmem [resolvable:$true] %s402
      %408 = dma.vmem_to_hbm [thread:$0]  %s403, 32, %s7, [#allocation3], 32, 32, 2
    $region33: #{encoder_forward.1} parent=1 // pred_fallthru
      _
    // Predicated region
    $region34: #{encoder_forward.1} parent=1 // pred_check
      _
    $region35: #{encoder_forward.1} parent=1 // pred_check_branch
      %410 = sbr.rel (0) target = $region37
    $region36: #{encoder_forward.1} parent=1 // pred_region
      %411 = dma.done [#allocation3], 256
    $region37: #{encoder_forward.1} parent=1 // pred_fallthru
      _
    %412 = vsyncpa [#allocation3], 1

</llo_original>
